<compile_context>
chip_gen: v7x
topology: tpu7x:2x2x1
jax: 0.10.0
libtpu: 0.0.40
codegen_flags: <defaults>
</compile_context>

<pallas_src>
import functools

import jax
import jax.numpy as jnp
from jax.experimental import pallas as pl
from jax.experimental.pallas import tpu as pltpu

EMBEDDING_DIM = 20
IN_DIM = 2 * EMBEDDING_DIM        # 40
HID_DIM = 8
OUT_DIM = 2

# Packed parameter buffer layout (rows x 8 cols, f32), all (8,128)-tile aligned:
W1_ROW = 0                         # rows  0..39 : w1 [40, 8]
W2_ROW = 40                        # rows 40..47 : w2 [8, 2]  (cols 0..1)
B1_ROW = 48                        # row  48     : b1 [8]
B2_ROW = 49                        # row  49     : b2 [2]     (row form,   cols 0..1)
B2_COL_ROW = 50                    # rows 50..51 : b2 [2, 1]  (column form, col 0)
PARAM_ROWS = 56                    # padded to a multiple of 8 sublanes


def _mlp_kernel(x_ref, p_ref, o_ref, *, transposed):
    # x_ref: [tb, IN_DIM] batch tile (any float dtype).  p_ref: packed params.
    x = x_ref[...].astype(jnp.float32)                      # upcast (bf16 -> f32 is free-ish)
    p = p_ref[...]                                           # [56, 8] f32, resident
    w1 = p[W1_ROW:W1_ROW + IN_DIM, :]                        # [40, 8]
    w2 = p[W2_ROW:W2_ROW + HID_DIM, 0:OUT_DIM]               # [8, 2]
    b1 = p[B1_ROW:B1_ROW + 1, :]                             # [1, 8]

    h = jnp.dot(x, w1, preferred_element_type=jnp.float32) + b1
    h = jnp.maximum(h, 0.0)                                   # ReLU

    if transposed:
        # Lane-dense output: y_t[o, t] = sum_k w2[k, o] * h[t, k]  -> [2, tb]
        b2_col = p[B2_COL_ROW:B2_COL_ROW + OUT_DIM, 0:1]      # [2, 1]
        y = jax.lax.dot_general(
            w2, h, dimension_numbers=(((0,), (1,)), ((), ())),
            preferred_element_type=jnp.float32) + b2_col
    else:
        b2_row = p[B2_ROW:B2_ROW + 1, 0:OUT_DIM]              # [1, 2]
        y = jnp.dot(h, w2, preferred_element_type=jnp.float32) + b2_row

    o_ref[...] = y.astype(o_ref.dtype)


def _pack_params(w1, b1, w2, b2):
    """Pack (w1[40,8], b1[8], w2[8,2], b2[2]) into one tile-aligned [56,8] f32 buffer."""
    p = jnp.zeros((PARAM_ROWS, HID_DIM), jnp.float32)
    p = p.at[W1_ROW:W1_ROW + IN_DIM, :].set(w1.astype(jnp.float32))
    p = p.at[W2_ROW:W2_ROW + HID_DIM, 0:OUT_DIM].set(w2.astype(jnp.float32))
    p = p.at[B1_ROW, :].set(b1.astype(jnp.float32))
    p = p.at[B2_ROW, 0:OUT_DIM].set(b2.astype(jnp.float32))
    p = p.at[B2_COL_ROW:B2_COL_ROW + OUT_DIM, 0].set(b2.astype(jnp.float32))
    return p


def _vmem_budget_bytes():
    """Conservative scoped-VMEM budget; chip-aware when the query is available."""
    cap = None
    try:
        cap = getattr(pltpu.get_tpu_info(), "vmem_capacity_bytes", None)
    except Exception:
        cap = None
    if not cap:
        cap = 64 << 20          # assume v7x-sized VMEM if we can't tell
    return int(min(cap // 2, 64 << 20))


def _choose_tb(B, tb_max, align, vmem_rows_cap):
    """Pick the batch tile: big (few pipeline steps), VMEM-safe, even step count."""
    tb_cap = max(align, (min(tb_max, vmem_rows_cap) // align) * align)
    if B <= tb_cap:
        return B                               # single tile == full array dim
    steps = -(-B // tb_cap)                    # cdiv
    if steps % 2:                              # even split across v7x's 2 TCs
        steps += 1
    tb = -(-B // steps)
    tb = -(-tb // align) * align               # keep (8,128)-divisibility
    return min(tb, tb_cap)


def net_forward(x, w1, b1, w2, b2, *, tb_max=8192, transposed_out=False):
    """x: [B, 2*EMBEDDING_DIM] float -> [B, 2] f32 (or [2, B] if transposed_out)."""
    B = x.shape[0]
    assert x.shape[1] == IN_DIM
    params = _pack_params(w1, b1, w2, b2)

    # Lane-padded VMEM accounting (last dim pads to 128 lanes, 4 B/elem):
    #   x: 2 buffers * tb*512 B, out: 2 * (tb*512 B or ~8*tb*4 B if transposed),
    #   in-kernel temps (h etc.): ~3 * tb*512 B, params: ~56 KiB.
    budget = _vmem_budget_bytes()
    bytes_per_row = 2624 if transposed_out else 3584
    vmem_rows_cap = max(512, (3 * budget // 4) // bytes_per_row)
    align = 128 if transposed_out else 8       # last-dim blocks need 128-lane multiples
    tb = _choose_tb(B, tb_max, align, vmem_rows_cap)

    if transposed_out:
        out_shape = jax.ShapeDtypeStruct((OUT_DIM, B), jnp.float32)
        out_spec = pl.BlockSpec((OUT_DIM, tb), lambda i: (0, i))
    else:
        out_shape = jax.ShapeDtypeStruct((B, OUT_DIM), jnp.float32)
        out_spec = pl.BlockSpec((tb, OUT_DIM), lambda i: (i, 0))

    x_itemsize = jnp.dtype(x.dtype).itemsize
    cost = pl.CostEstimate(
        flops=B * (2 * IN_DIM * HID_DIM + 2 * HID_DIM * OUT_DIM),
        transcendentals=0,
        bytes_accessed=B * (IN_DIM * x_itemsize + OUT_DIM * 4)
        + PARAM_ROWS * HID_DIM * 4,
    )

    return pl.pallas_call(
        functools.partial(_mlp_kernel, transposed=transposed_out),
        out_shape=out_shape,
        grid_spec=pltpu.PrefetchScalarGridSpec(
            num_scalar_prefetch=0,
            grid=(pl.cdiv(B, tb),),
            in_specs=[
                # Batch-tiled input (streams through VMEM, double-buffered).
                pl.BlockSpec((tb, IN_DIM), lambda i: (i, 0)),
                # Packed params: constant index_map -> DMA'd once, stays resident.
                pl.BlockSpec((PARAM_ROWS, HID_DIM), lambda i: (0, 0)),
            ],
            out_specs=out_spec,
        ),
        compiler_params=pltpu.CompilerParams(
            dimension_semantics=("parallel",),   # independent batch tiles -> 2 TCs on v7x
            vmem_limit_bytes=budget,
        ),
        cost_estimate=cost,
    )(x, params)


def _init_params(key):
    """Deterministic init mimicking nn.Linear's uniform(-1/sqrt(fan_in), ...)."""
    k1, k2, k3, k4 = jax.random.split(key, 4)
    bound1 = 1.0 / jnp.sqrt(IN_DIM)
    bound2 = 1.0 / jnp.sqrt(HID_DIM)
    w1 = jax.random.uniform(k1, (IN_DIM, HID_DIM), jnp.float32, -bound1, bound1)
    b1 = jax.random.uniform(k2, (HID_DIM,), jnp.float32, -bound1, bound1)
    w2 = jax.random.uniform(k3, (HID_DIM, OUT_DIM), jnp.float32, -bound2, bound2)
    b2 = jax.random.uniform(k4, (OUT_DIM,), jnp.float32, -bound2, bound2)
    return w1, b1, w2, b2


def _reference(x, w1, b1, w2, b2):
    return jnp.maximum(x.astype(jnp.float32) @ w1 + b1, 0.0) @ w2 + b2


if __name__ == "__main__":
    key = jax.random.PRNGKey(0)
    kx, kx2, kx3, kp = jax.random.split(key, 4)
    w1, b1, w2, b2 = _init_params(kp)

    # 1) Small batch, single tile, default [B, 2] output.
    B = 8
    x = jax.random.normal(kx, (B, IN_DIM), jnp.float32)
    out = net_forward(x, w1, b1, w2, b2)
    jax.block_until_ready(out)
    ref = _reference(x, w1, b1, w2, b2)
    assert out.shape == (B, OUT_DIM)
    assert jnp.allclose(out, ref, atol=1e-5, rtol=1e-5)

    # 2) Multi-step grid + partial last tile + even-step heuristic (forced small tb).
    B2 = 1030
    x2 = jax.random.normal(kx2, (B2, IN_DIM), jnp.float32)
    out2 = net_forward(x2, w1, b1, w2, b2, tb_max=256)
    jax.block_until_ready(out2)
    ref2 = _reference(x2, w1, b1, w2, b2)
    assert out2.shape == (B2, OUT_DIM)
    assert jnp.allclose(out2, ref2, atol=1e-5, rtol=1e-5)

    # 3) Lane-dense transposed output path ([2, B]).
    out3 = net_forward(x2, w1, b1, w2, b2, tb_max=256, transposed_out=True)
    jax.block_until_ready(out3)
    assert out3.shape == (OUT_DIM, B2)
    assert jnp.allclose(out3.T, ref2, atol=1e-5, rtol=1e-5)

    # 4) bf16 input (halves HBM read traffic; compute still f32 in-kernel).
    B3 = 64
    x3 = jax.random.normal(kx3, (B3, IN_DIM), jnp.float32).astype(jnp.bfloat16)
    out4 = net_forward(x3, w1, b1, w2, b2)
    jax.block_until_ready(out4)
    ref4 = _reference(x3, w1, b1, w2, b2)
    assert out4.shape == (B3, OUT_DIM)
    assert jnp.allclose(out4, ref4, atol=1e-5, rtol=1e-5)

    print("KERNEL_OK")
</pallas_src>

<mosaic_0001>
module attributes {stable_mosaic.version = 11 : i64} {
  func.func @_mlp_kernel(%arg0: i32, %arg1: memref<8x40xf32, #tpu.memory_space<vmem>>, %arg2: memref<56x8xf32, #tpu.memory_space<vmem>>, %arg3: memref<8x2xf32, #tpu.memory_space<vmem>>) attributes {dimension_semantics = [#tpu.dimension_semantics<parallel>], iteration_bounds = array<i64: 1>, scalar_prefetch = 0 : i64, scratch_operands = 0 : i64, tpu.core_type = #tpu.core_type<tc>, window_params = [{transform_indices = @transform_0, window_bounds = array<i64: 8, 40>}, {pipeline_mode = #tpu.pipeline_mode<synchronous>, transform_indices = @transform_1, window_bounds = array<i64: 56, 8>}, {transform_indices = @transform_2, window_bounds = array<i64: 8, 2>}]} {
    %c0 = arith.constant 0 : index
    %c0_0 = arith.constant 0 : index
    %0 = vector.load %arg1[%c0, %c0_0] : memref<8x40xf32, #tpu.memory_space<vmem>>, vector<8x40xf32>
    %c0_1 = arith.constant 0 : index
    %c0_2 = arith.constant 0 : index
    %1 = vector.load %arg2[%c0_1, %c0_2] : memref<56x8xf32, #tpu.memory_space<vmem>>, vector<56x8xf32>
    %2 = vector.extract_strided_slice %1 {offsets = [0, 0], sizes = [40, 8], strides = [1, 1]} : vector<56x8xf32> to vector<40x8xf32>
    %3 = vector.extract_strided_slice %1 {offsets = [40, 0], sizes = [8, 2], strides = [1, 1]} : vector<56x8xf32> to vector<8x2xf32>
    %4 = vector.extract_strided_slice %1 {offsets = [48, 0], sizes = [1, 8], strides = [1, 1]} : vector<56x8xf32> to vector<1x8xf32>
    %cst = arith.constant dense<0.000000e+00> : vector<8x8xf32>
    %5 = tpu.matmul %0, %2, %cst {dimension_numbers = #tpu.dot_dimension_numbers<[1], [0], [0], [1], [0, 0, 1, 1], [], []>} : vector<8x40xf32>, vector<40x8xf32>, vector<8x8xf32> -> vector<8x8xf32>
    %6 = vector.broadcast %4 : vector<1x8xf32> to vector<8x8xf32>
    %7 = arith.addf %5, %6 : vector<8x8xf32>
    %cst_3 = arith.constant 0.000000e+00 : f32
    %8 = vector.broadcast %cst_3 : f32 to vector<8x8xf32>
    %9 = arith.maximumf %7, %8 : vector<8x8xf32>
    %10 = vector.extract_strided_slice %1 {offsets = [49, 0], sizes = [1, 2], strides = [1, 1]} : vector<56x8xf32> to vector<1x2xf32>
    %cst_4 = arith.constant dense<0.000000e+00> : vector<8x2xf32>
    %11 = tpu.matmul %9, %3, %cst_4 {dimension_numbers = #tpu.dot_dimension_numbers<[1], [0], [0], [1], [0, 0, 1, 1], [], []>} : vector<8x8xf32>, vector<8x2xf32>, vector<8x2xf32> -> vector<8x2xf32>
    %12 = vector.broadcast %10 : vector<1x2xf32> to vector<8x2xf32>
    %13 = arith.addf %11, %12 : vector<8x2xf32>
    %c0_5 = arith.constant 0 : index
    %c0_6 = arith.constant 0 : index
    %14 = vector.load %arg3[%c0_5, %c0_6] : memref<8x2xf32, #tpu.memory_space<vmem>>, vector<8x2xf32>
    tpu.vector_store %arg3[%c0_5, %c0_6], %13 {strides = array<i32>} : memref<8x2xf32, #tpu.memory_space<vmem>>, vector<8x2xf32>,
    return
  }
  func.func @transform_0(%arg0: i32) -> (i32, i32) {
    %c0_i32 = arith.constant 0 : i32
    %c0_i32_0 = arith.constant 0 : i32
    return %arg0, %c0_i32 : i32, i32
  }
  func.func @transform_1(%arg0: i32) -> (i32, i32) {
    %c0_i32 = arith.constant 0 : i32
    %c0_i32_0 = arith.constant 0 : i32
    %c0_i32_1 = arith.constant 0 : i32
    return %c0_i32, %c0_i32_0 : i32, i32
  }
  func.func @transform_2(%arg0: i32) -> (i32, i32) {
    %c0_i32 = arith.constant 0 : i32
    %c0_i32_0 = arith.constant 0 : i32
    return %arg0, %c0_i32 : i32, i32
  }
}

</mosaic_0001>

<llo_original>
// kernel: tpu_custom_call.1
$region0: #{tpu_custom_call.1}
  #allocation0 [shape = 'u32[]', space=smem, size = 0x4, offset = 0x4, fixed_abs, tag = 'smem constant byte address 0x4 - core index']
  #allocation1 [shape = 'u32[144,128]{1,0:T(1,128)}', space=vmem, size = 0x12000, scoped, tag = 'internal scratch']
  %s0 = inlined_call_operand.vmem [shape: f32[8,40], index: 0, kind: input, shape index: {}]
  %s1 = inlined_call_operand.vmem [shape: f32[56,8], index: 1, kind: input, shape index: {}]
  %s2 = inlined_call_operand.vmem [shape: f32[8,2], index: 2, kind: output, shape index: {}]
  %s3 = sld [smem:[#allocation0]]
  $region18: #{tpu_custom_call.1} parent=0
    _
  %s5 = ssub.s32 1, %s3
  %s6 = scalar_select 0, %s5, %s3
  // Predicated region
  $region2: #{tpu_custom_call.1} parent=0 // pred_check
    _
  $region3: #{tpu_custom_call.1} parent=0 // pred_check_branch
    %8 = sbr.rel (0) target = $region5
  $region4: #{tpu_custom_call.1} parent=0 // pred_region
    _
  $region5: #{tpu_custom_call.1} parent=0 // pred_fallthru
    _
  // Predicated region
  $region6: #{tpu_custom_call.1} parent=0 // pred_check
    _
  $region7: #{tpu_custom_call.1} parent=0 // pred_check_branch
    %10 = sbr.rel (0) target = $region9
  $region8: #{tpu_custom_call.1} parent=0 // pred_region
    _
  $region9: #{tpu_custom_call.1} parent=0 // pred_fallthru
    _
  %v11 = vld [vmem:[%s0] sm:$0xff]
  %v12 = vld [vmem:[%s1] sm:$0xff]
  %v13 = vld [vmem:[%s1 + $0x8] sm:$0xff]
  %v14 = vld [vmem:[%s1 + $0x10] sm:$0xff]
  %v15 = vld [vmem:[%s1 + $0x18] sm:$0xff]
  %v16 = vld [vmem:[%s1 + $0x20] sm:$0xff]
  %v17 = vld [vmem:[%s1 + $0x28] sm:$0xff]
  %v18 = vld [vmem:[%s1 + $0x30] sm:$0xff]
  %v19 = vlaneseq
  %v20 = vshrl.u32 %v19, 7
  %v21 = vsub.s32 0, %v20
  %v22 = vrot.slane %v18, %v21
  %vm23 = vcmask 326656
  %v25 = vsel %vm23, %v11, 0
  %27 = vmatprep.subr.mxu0 0.0
  %28 = vmatpush1.msra.mxu0 %v12
  %29 = vmatprep.subr.mxu0 0.0
  %30 = vmatpush1.msra.mxu0 %v13
  %31 = vmatprep.subr.mxu0 0.0
  %32 = vmatpush1.msra.mxu0 %v14
  %33 = vmatprep.subr.mxu0 0.0
  %34 = vmatpush1.msra.mxu0 %v15
  %35 = vmatprep.subr.mxu0 0.0
  %36 = vmatpush1.msra.mxu0 %v16
  %37 = vmatprep.subr.mxu0 0.0
  %38 = vmatpush1.msra.mxu0 0.0
  %39 = vmatprep.subr.mxu0 0.0
  %40 = vmatpush1.msra.mxu0 0.0
  %41 = vmatprep.subr.mxu0 0.0
  %42 = vmatpush1.msra.mxu0 0.0
  %43 = vmatprep.subr.mxu0 0.0
  %44 = vmatpush1.msra.mxu0 0.0
  %45 = vmatprep.subr.mxu0 0.0
  %46 = vmatpush1.msra.mxu0 0.0
  %47 = vmatprep.subr.mxu0 0.0
  %48 = vmatpush1.msra.mxu0 0.0
  %49 = vmatprep.subr.mxu0 0.0
  %50 = vmatpush1.msra.mxu0 0.0
  %51 = vmatprep.subr.mxu0 0.0
  %52 = vmatpush1.msra.mxu0 0.0
  %53 = vmatprep.subr.mxu0 0.0
  %54 = vmatpush1.msra.mxu0 0.0
  %55 = vmatprep.subr.mxu0 0.0
  %56 = vmatpush1.msra.mxu0 0.0
  %57 = vmatprep.subr.mxu0 0.0
  %58 = vmatpush1.msra.mxu0 0.0
  %59 = vmatprep.subr.mxu0 0.0
  %60 = vmatpush1.msra.mxu0 0.0
  %61 = vmatprep.subr.mxu0 0.0
  %62 = vmatpush1.msra.mxu0 0.0
  %63 = vmatprep.subr.mxu0 0.0
  %64 = vmatpush1.msra.mxu0 0.0
  %65 = vmatprep.subr.mxu0 0.0
  %66 = vmatpush1.msra.mxu0 0.0
  %67 = vmatprep.subr.mxu0 0.0
  %68 = vmatpush1.msra.mxu0 0.0
  %69 = vmatprep.subr.mxu0 0.0
  %70 = vmatpush1.msra.mxu0 0.0
  %71 = vmatprep.subr.mxu0 0.0
  %72 = vmatpush1.msra.mxu0 0.0
  %73 = vmatprep.subr.mxu0 0.0
  %74 = vmatpush1.msra.mxu0 0.0
  %75 = vmatprep.subr.mxu0 0.0
  %76 = vmatpush1.msra.mxu0 0.0
  %77 = vmatprep.subr.mxu0 0.0
  %78 = vmatpush1.msra.mxu0 0.0
  %79 = vmatprep.subr.mxu0 0.0
  %80 = vmatpush1.msra.mxu0 0.0
  %81 = vmatprep.subr.mxu0 0.0
  %82 = vmatpush1.msra.mxu0 0.0
  %83 = vmatprep.subr.mxu0 0.0
  %84 = vmatpush1.msra.mxu0 0.0
  %85 = vmatprep.subr.mxu0 0.0
  %86 = vmatpush1.msra.mxu0 0.0
  %87 = vmatprep.subr.mxu0 0.0
  %88 = vmatpush1.msra.mxu0 0.0
  %89 = vmatprep.subr.mxu0 0.0
  %90 = vmatpush1.msra.mxu0 0.0
  %91 = vmatprep.mubr.f32.mxu0 0.0
  %92 = vmatmul.mubr.f32.gmra.mrb[0].mxu0 %v25
  %v93 = vpop.f32.mrb[0].mxu0
  %v94 = vadd.f32 %v22, %v93
  %v95 = vpop.f32.mrb[0].mxu0
  %96 = vdwg.mxu0
  %v97 = vmax.f32 %v94, 0.0
  %v98 = vlaneseq
  %v99 = vshrl.u32 %v98, 7
  %v100 = vsub.s32 1, %v99
  %v101 = vrot.slane %v18, %v100
  %vm102 = vcmask 64512
  %v104 = vsel %vm102, %v97, 0
  %106 = vmatprep.subr.mxu0 0.0
  %107 = vmatpush1.msra.mxu0 %v17
  %108 = vmatprep.subr.mxu0 0.0
  %109 = vmatpush1.msra.mxu0 0.0
  %110 = vmatprep.subr.mxu0 0.0
  %111 = vmatpush1.msra.mxu0 0.0
  %112 = vmatprep.subr.mxu0 0.0
  %113 = vmatpush1.msra.mxu0 0.0
  %114 = vmatprep.subr.mxu0 0.0
  %115 = vmatpush1.msra.mxu0 0.0
  %116 = vmatprep.subr.mxu0 0.0
  %117 = vmatpush1.msra.mxu0 0.0
  %118 = vmatprep.subr.mxu0 0.0
  %119 = vmatpush1.msra.mxu0 0.0
  %120 = vmatprep.subr.mxu0 0.0
  %121 = vmatpush1.msra.mxu0 0.0
  %122 = vmatprep.subr.mxu0 0.0
  %123 = vmatpush1.msra.mxu0 0.0
  %124 = vmatprep.subr.mxu0 0.0
  %125 = vmatpush1.msra.mxu0 0.0
  %126 = vmatprep.subr.mxu0 0.0
  %127 = vmatpush1.msra.mxu0 0.0
  %128 = vmatprep.subr.mxu0 0.0
  %129 = vmatpush1.msra.mxu0 0.0
  %130 = vmatprep.subr.mxu0 0.0
  %131 = vmatpush1.msra.mxu0 0.0
  %132 = vmatprep.subr.mxu0 0.0
  %133 = vmatpush1.msra.mxu0 0.0
  %134 = vmatprep.subr.mxu0 0.0
  %135 = vmatpush1.msra.mxu0 0.0
  %136 = vmatprep.subr.mxu0 0.0
  %137 = vmatpush1.msra.mxu0 0.0
  %138 = vmatprep.subr.mxu0 0.0
  %139 = vmatpush1.msra.mxu0 0.0
  %140 = vmatprep.subr.mxu0 0.0
  %141 = vmatpush1.msra.mxu0 0.0
  %142 = vmatprep.subr.mxu0 0.0
  %143 = vmatpush1.msra.mxu0 0.0
  %144 = vmatprep.subr.mxu0 0.0
  %145 = vmatpush1.msra.mxu0 0.0
  %146 = vmatprep.subr.mxu0 0.0
  %147 = vmatpush1.msra.mxu0 0.0
  %148 = vmatprep.subr.mxu0 0.0
  %149 = vmatpush1.msra.mxu0 0.0
  %150 = vmatprep.subr.mxu0 0.0
  %151 = vmatpush1.msra.mxu0 0.0
  %152 = vmatprep.subr.mxu0 0.0
  %153 = vmatpush1.msra.mxu0 0.0
  %154 = vmatprep.subr.mxu0 0.0
  %155 = vmatpush1.msra.mxu0 0.0
  %156 = vmatprep.subr.mxu0 0.0
  %157 = vmatpush1.msra.mxu0 0.0
  %158 = vmatprep.subr.mxu0 0.0
  %159 = vmatpush1.msra.mxu0 0.0
  %160 = vmatprep.subr.mxu0 0.0
  %161 = vmatpush1.msra.mxu0 0.0
  %162 = vmatprep.subr.mxu0 0.0
  %163 = vmatpush1.msra.mxu0 0.0
  %164 = vmatprep.subr.mxu0 0.0
  %165 = vmatpush1.msra.mxu0 0.0
  %166 = vmatprep.subr.mxu0 0.0
  %167 = vmatpush1.msra.mxu0 0.0
  %168 = vmatprep.subr.mxu0 0.0
  %169 = vmatpush1.msra.mxu0 0.0
  %170 = vmatprep.mubr.f32.mxu0 0.0
  %171 = vmatmul.mubr.f32.gmra.mrb[0].mxu0 %v104
  %v172 = vpop.f32.mrb[0].mxu0
  %v173 = vadd.f32 %v101, %v172
  %v174 = vpop.f32.mrb[0].mxu0
  %175 = vdwg.mxu0
  %vm176 = vcmask 15360
  %177 = vst.msk [vmem:[%s2] sm:$0xff] %vm176, %v173
  // Predicated region
  $region10: #{tpu_custom_call.1} parent=0 // pred_check
    _
  $region11: #{tpu_custom_call.1} parent=0 // pred_check_branch
    %179 = sbr.rel (0) target = $region13
  $region12: #{tpu_custom_call.1} parent=0 // pred_region
    _
  $region13: #{tpu_custom_call.1} parent=0 // pred_fallthru
    _
  // Predicated region
  $region14: #{tpu_custom_call.1} parent=0 // pred_check
    _
  $region15: #{tpu_custom_call.1} parent=0 // pred_check_branch
    %181 = sbr.rel (0) target = $region17
  $region16: #{tpu_custom_call.1} parent=0 // pred_region
    _
  $region17: #{tpu_custom_call.1} parent=0 // pred_fallthru
    _

</llo_original>
